<compile_context>
chip_gen: v5e
topology: v5e:2x2
jax: 0.10.0
libtpu: 0.0.40
codegen_flags: <defaults>
</compile_context>

<pallas_src>
import jax
import jax.numpy as jnp
from jax.experimental import pallas as pl
from jax.experimental.pallas import tpu as pltpu


def _hbm_identity_kernel(x_hbm_ref, o_hbm_ref, copy_sem):
    # Pure pass-through: one direct HBM -> HBM DMA of the whole array.
    cp = pltpu.make_async_copy(x_hbm_ref, o_hbm_ref, copy_sem)
    cp.start()
    cp.wait()


def _pallas_identity_2d(x2d: jax.Array) -> jax.Array:
    return pl.pallas_call(
        _hbm_identity_kernel,
        out_shape=jax.ShapeDtypeStruct(x2d.shape, x2d.dtype),
        in_specs=[pl.BlockSpec(memory_space=pl.ANY)],   # raw HBM ref, no auto-DMA
        out_specs=pl.BlockSpec(memory_space=pl.ANY),    # raw HBM ref, we DMA into it
        scratch_shapes=[pltpu.SemaphoreType.DMA(())],
    )(x2d)


def encoder_forward(x: jax.Array, *args) -> jax.Array:
    """Identity 'forward' for the abstract Encoder, run through Pallas.

    x: NCHW (or any-shape) array.  Returns an array identical to x.
    """
    orig_shape = x.shape
    total = x.size
    if total == 0:
        return x

    # ---- lane-dense 2D view: widest lane factor first ----------------------
    lanes = None
    for cand in (4096, 2048, 1024, 512, 256, 128):
        if total % cand == 0:
            lanes = cand
            break
    if lanes is None:
        # No 128-divisible factorization: the forward is an exact identity,
        # so skip the HBM round trip entirely (zero extra HBM traffic).
        return x

    rows = total // lanes
    out2d = _pallas_identity_2d(x.reshape(rows, lanes))
    return out2d.reshape(orig_shape)


if __name__ == "__main__":
    key = jax.random.PRNGKey(0)

    # Small NCHW input consistent with what an Encoder subclass would see.
    x = jax.random.normal(key, (2, 4, 16, 16), dtype=jnp.float32)
    y = jax.block_until_ready(encoder_forward(x))
    assert y.shape == x.shape and y.dtype == x.dtype
    assert bool(jnp.array_equal(y, x))

    # Second sanity check: a larger shape exercising the wide-lane (4096) view.
    x2 = jax.random.normal(jax.random.PRNGKey(1), (8, 16, 128, 64),
                           dtype=jnp.float32)
    y2 = jax.block_until_ready(encoder_forward(x2))
    assert y2.shape == x2.shape and bool(jnp.array_equal(y2, x2))

    print("KERNEL_OK")
</pallas_src>

<mosaic_0001>
module attributes {stable_mosaic.version = 11 : i64} {
  func.func @_hbm_identity_kernel(%arg0: memref<1x2048xf32, #tpu.memory_space<any>>, %arg1: memref<1x2048xf32, #tpu.memory_space<any>>, %arg2: memref<!tpu.dma_semaphore, #tpu.memory_space<semaphore_mem>>) attributes {dimension_semantics = [], scalar_prefetch = 0 : i64, scratch_operands = 1 : i64, tpu.core_type = #tpu.core_type<tc>} {
    tpu.enqueue_dma source(%arg0 : memref<1x2048xf32, #tpu.memory_space<any>>) target(%arg1 : memref<1x2048xf32, #tpu.memory_space<any>>) target_semaphore(%arg2 : memref<!tpu.dma_semaphore, #tpu.memory_space<semaphore_mem>>)
    tpu.wait_dma2 semaphore(%arg2 : memref<!tpu.dma_semaphore, #tpu.memory_space<semaphore_mem>>) src(%arg0 : memref<1x2048xf32, #tpu.memory_space<any>>) dst(%arg1 : memref<1x2048xf32, #tpu.memory_space<any>>)
    return
  }
}

</mosaic_0001>

<llo_original>
// kernel: tpu_custom_call.1
$region0: #{tpu_custom_call.1}
  #allocation0 [shape = 'u32[]', space=smem, size = 0x4, offset = 0x4, fixed_abs, tag = 'smem constant byte address 0x4 - core index']
  #allocation1 [shape = 'u32[72,128]{1,0:T(1,128)}', space=vmem, size = 0x9000, scoped, tag = 'internal scratch']
  #allocation2 [shape = 's32[1]{0}', space=sflag, size = 0x4, scoped, tag = 'scratch operand']
  #allocation3 [shape = 's32[]', space=sflag, size = 0x4, offset = 0, fixed_abs, tag = 'sflag constant byte address 0x0 - dummy sync flag']
  #allocation4 [shape = 'u32[0]{0}', space=smem, size = 0, offset = 0, fixed_abs, tag = 'smem constant byte address 0x0 - null']
  %s0 = inlined_call_operand.hbm [shape: f32[1,2048], index: 0, kind: input, shape index: {}]
  %s1 = inlined_call_operand.hbm [shape: f32[1,2048], index: 1, kind: output, shape index: {}]
  %s2 = sld [smem:[#allocation0]]
  $region2: #{tpu_custom_call.1} parent=0
    _
  %s4 = ssub.s32 1, %s2
  %s5 = scalar_select 0, %s4, %s2
  %s7 = sshll.u32 1, 14
  %s8 = sxor.u32 4294967295, %s7
  %s10 = sshll.u32 %s0, 4
  %s11 = int_to_ptr.hbm [resolvable:$true] %s10
  %s12 = sshll.u32 %s1, 4
  %s13 = int_to_ptr.hbm [resolvable:$true] %s12
  %16 = dma.general %s11, 256, %s13, [#allocation2], [#allocation3], [#allocation4], 0, 0
  %s17 = smul.u32 1, 16
  %s18 = sshll.u32 %s17, 4
  %19 = dma.done [#allocation2], %s18
  %20 = vsyncmov [#allocation2]
  %s21 = vpop.sfrf %20
  %p22 = scmp.eq.s32.totalorder %s21, 0
  %p23 = pneg %p22
  %25 = shalt.err (%p23)

</llo_original>
